<compile_context>
chip_gen: v6e
topology: v6e:2x2x1
jax: 0.10.0
libtpu: 0.0.40
codegen_flags: <defaults>
</compile_context>

<pallas_src>
import jax
import jax.numpy as jnp
from jax.experimental import pallas as pl
from jax.experimental.pallas import tpu as pltpu


def _margins_kernel(params_ref, out_ref):
    # Two scalar SMEM copies: out = [m1, m2].
    out_ref[0] = params_ref[0]
    out_ref[1] = params_ref[1]


def learnable_margins_forward_packed(params):
    """params: (2,) float32 array holding [m1, m2]. Returns the packed (2,) vector.

    Prefer this (or better: fuse the SMEM read into the consumer kernel) when the
    downstream op can consume the packed margins directly — it avoids the two
    tiny scalar-slice HLOs of the tuple-returning wrapper.
    """
    return pl.pallas_call(
        _margins_kernel,
        out_shape=jax.ShapeDtypeStruct((2,), jnp.float32),
        in_specs=[pl.BlockSpec(memory_space=pltpu.SMEM)],
        out_specs=pl.BlockSpec(memory_space=pltpu.SMEM),
    )(params)


def learnable_margins_forward(params):
    """Returns (m1, m2) as float32 scalars, matching the PyTorch forward()."""
    margins = learnable_margins_forward_packed(params)
    return margins[0], margins[1]


def init_learnable_margins(m1_init=0.0, m2_init=0.2):
    """Deterministic parameter initialization mirroring LearnableMargins.__init__."""
    return jnp.array([m1_init, m2_init], dtype=jnp.float32)


if __name__ == "__main__":
    # PRNGKey is created only for API consistency; init is deterministic
    # constants, exactly like the PyTorch module's __init__.
    _ = jax.random.PRNGKey(0)

    params = init_learnable_margins(m1_init=0.0, m2_init=0.2)

    m1, m2 = learnable_margins_forward(params)
    jax.block_until_ready((m1, m2))

    assert m1.dtype == jnp.float32 and m2.dtype == jnp.float32
    assert float(m1) == 0.0
    assert abs(float(m2) - 0.2) < 1e-6

    print("KERNEL_OK")
</pallas_src>

<mosaic_0001>
module attributes {stable_mosaic.version = 11 : i64} {
  func.func @_margins_kernel(%arg0: memref<2xf32, #tpu.memory_space<smem>>, %arg1: memref<2xf32, #tpu.memory_space<smem>>) attributes {dimension_semantics = [], scalar_prefetch = 0 : i64, scratch_operands = 0 : i64, tpu.core_type = #tpu.core_type<tc>} {
    %c0 = arith.constant 0 : index
    %0 = memref.load %arg0[%c0] : memref<2xf32, #tpu.memory_space<smem>>
    %c0_0 = arith.constant 0 : index
    %1 = memref.load %arg1[%c0_0] : memref<2xf32, #tpu.memory_space<smem>>
    memref.store %0, %arg1[%c0_0] : memref<2xf32, #tpu.memory_space<smem>>
    %c1 = arith.constant 1 : index
    %2 = memref.load %arg0[%c1] : memref<2xf32, #tpu.memory_space<smem>>
    %c1_1 = arith.constant 1 : index
    %3 = memref.load %arg1[%c1_1] : memref<2xf32, #tpu.memory_space<smem>>
    memref.store %2, %arg1[%c1_1] : memref<2xf32, #tpu.memory_space<smem>>
    return
  }
}

</mosaic_0001>

<llo_original>
// kernel: tpu_custom_call.1
$region0: #{tpu_custom_call.1}
  #allocation0 [shape = 'u32[]', space=smem, size = 0x4, offset = 0x4, fixed_abs, tag = 'smem constant byte address 0x4 - core index']
  #allocation1 [shape = 'u32[144,128]{1,0:T(1,128)}', space=vmem, size = 0x12000, scoped, tag = 'internal scratch']
  %s0 = inlined_call_operand.hbm [shape: f32[2], index: 0, kind: input, shape index: {}]
  %s1 = inlined_call_operand.hbm [shape: f32[2], index: 1, kind: output, shape index: {}]
  %s2 = sld [smem:[#allocation0]]
  $region18: #{tpu_custom_call.1} parent=0
    _
  %s4 = ssub.s32 1, %s2
  %s5 = scalar_select 0, %s4, %s2
  $region1: #{tpu_custom_call.1} parent=0
    #allocation2 [shape = 'u8[512]{0}', space=smem, size = 0x200, scoped, tag = 'input window, operand 0, single buffered']
    #allocation3 [shape = 's32[1]{0}', space=sflag, size = 0x4, scoped, tag = 'scoped memory for tpu_custom_call.1']
    #allocation4 [shape = 's32[1]{0}', space=sflag, size = 0x4, scoped, tag = 'scoped memory for tpu_custom_call.1']
    #allocation5 [shape = 'u8[512]{0}', space=smem, size = 0x200, scoped, tag = 'output window, operand 0, single buffered']
    %6 = vsyncpa [#allocation3], 0
    %7 = vsyncpa [#allocation4], 0
    // Predicated region
    $region2: #{tpu_custom_call.1} parent=1 // pred_check
      _
    $region3: #{tpu_custom_call.1} parent=1 // pred_check_branch
      %9 = sbr.rel (0) target = $region5
    $region4: #{tpu_custom_call.1} parent=1 // pred_region
      %s11 = ssub.s32 16, 16
      %12 = vsyncadd [#allocation3], %s11
      %15 = dma.hbm_to_smem %s0, 16, [#allocation2], [#allocation3]
    $region5: #{tpu_custom_call.1} parent=1 // pred_fallthru
      _
    // Predicated region
    $region6: #{tpu_custom_call.1} parent=1 // pred_check
      _
    $region7: #{tpu_custom_call.1} parent=1 // pred_check_branch
      %17 = sbr.rel (0) target = $region9
    $region8: #{tpu_custom_call.1} parent=1 // pred_region
      %18 = dma.done [#allocation3], 16
    $region9: #{tpu_custom_call.1} parent=1 // pred_fallthru
      _
    %19 = sfence
    %s20 = sld [smem:[#allocation2]]
    %s21 = scalar_lea.smem [#allocation5], 0
    %22 = sst [smem:[%s21]] %s20
    %s23 = sld [smem:[#allocation2 + $0x1]]
    %s24 = scalar_lea.smem [#allocation5], 1
    %25 = sst [smem:[%s24]] %s23
    // Predicated region
    $region10: #{tpu_custom_call.1} parent=1 // pred_check
      _
    $region11: #{tpu_custom_call.1} parent=1 // pred_check_branch
      %27 = sbr.rel (0) target = $region13
    $region12: #{tpu_custom_call.1} parent=1 // pred_region
      %s29 = ssub.s32 16, 16
      %30 = vsyncadd [#allocation4], %s29
      %33 = dma.smem_to_hbm [#allocation5], 16, %s1, [#allocation4]
    $region13: #{tpu_custom_call.1} parent=1 // pred_fallthru
      _
    // Predicated region
    $region14: #{tpu_custom_call.1} parent=1 // pred_check
      _
    $region15: #{tpu_custom_call.1} parent=1 // pred_check_branch
      %35 = sbr.rel (0) target = $region17
    $region16: #{tpu_custom_call.1} parent=1 // pred_region
      %36 = dma.done [#allocation4], 16
    $region17: #{tpu_custom_call.1} parent=1 // pred_fallthru
      _
    %37 = sfence
    %38 = vsyncpa [#allocation3], 1
    %39 = vsyncpa [#allocation4], 1

</llo_original>
